<compile_context>
chip_gen: v7x
topology: tpu7x:2x2x1
jax: 0.10.0
libtpu: 0.0.40
codegen_flags: <defaults>
</compile_context>

<pallas_src>
import jax
import jax.numpy as jnp
from jax.experimental import pallas as pl
from jax.experimental.pallas import tpu as pltpu


def _round_up(x: int, m: int) -> int:
    return ((x + m - 1) // m) * m


def _mlp_kernel(s_ref, a_ref, w1s_ref, w1a_ref, b1_ref, w2_ref, b2_ref,
                w3_ref, b3_ref, o_ref):
    # Layer 1 with the concat fused: h1 = relu(s @ W1_s + a @ W1_a + b1)
    h1 = jnp.dot(s_ref[...], w1s_ref[...], preferred_element_type=jnp.float32)
    h1 = h1 + jnp.dot(a_ref[...], w1a_ref[...], preferred_element_type=jnp.float32)
    h1 = jnp.maximum(h1 + b1_ref[...], 0.0)
    # Layer 2: Linear + ReLU on a full (128,128) MXU tile.
    h2 = jnp.dot(h1, w2_ref[...], preferred_element_type=jnp.float32)
    h2 = jnp.maximum(h2 + b2_ref[...], 0.0)
    # Output layer (hidden -> 1): VPU multiply + cross-lane reduce instead of a
    # wasteful N=1 MXU matmul. w3_ref is the padded weight stored as a (1, H) row.
    r = jnp.sum(h2 * w3_ref[...], axis=-1, keepdims=True) + b3_ref[...]
    o_ref[...] = r.astype(o_ref.dtype)


def pack_params(params, state_dim):
    """Split W1 (fuses torch.cat) and zero-pad hidden dims to 128 lanes.

    Padding is explicit zeros, so ReLU(0)=0 padded channels contribute nothing.
    """
    w1, b1, w2, b2, w3, b3 = [jnp.asarray(p, jnp.float32) for p in params]
    h1, h2 = w1.shape[1], w2.shape[1]
    h1p, h2p = _round_up(h1, 128), _round_up(h2, 128)
    action_dim = w1.shape[0] - state_dim
    w1s = jnp.zeros((state_dim, h1p), jnp.float32).at[:, :h1].set(w1[:state_dim])
    w1a = jnp.zeros((action_dim, h1p), jnp.float32).at[:, :h1].set(w1[state_dim:])
    b1p = jnp.zeros((1, h1p), jnp.float32).at[:, :h1].set(b1)
    w2p = jnp.zeros((h1p, h2p), jnp.float32).at[:h1, :h2].set(w2)
    b2p = jnp.zeros((1, h2p), jnp.float32).at[:, :h2].set(b2)
    w3r = jnp.zeros((1, h2p), jnp.float32).at[:, :h2].set(w3.T)  # (1, h2p) row
    b3p = jnp.reshape(b3, (1, 1)).astype(jnp.float32)
    return (w1s, w1a, b1p, w2p, b2p, w3r, b3p)


def reward_predictor_forward(s, a, packed_params):
    """Pallas forward pass. s: (B, state_dim), a: (B, action_dim). Returns (B,)."""
    w1s, w1a, b1, w2, b2, w3r, b3 = packed_params
    B, state_dim = s.shape
    action_dim = a.shape[1]
    h1p, h2p = w1s.shape[1], w2.shape[1]
    s = s.astype(jnp.float32)
    a = a.astype(jnp.float32)

    # Batch tile: multiple of 256 (fills the MXU M dimension on v5e/v6e/v7x),
    # capped at 1024 so the double-buffered activation tiles stay well under the
    # 32 MiB scoped VMEM limit (v7x has only 64 MiB physical).
    tile_b = min(1024, _round_up(max(B, 1), 256))
    b_pad = _round_up(B, tile_b)
    if b_pad != B:
        s = jnp.pad(s, ((0, b_pad - B), (0, 0)))
        a = jnp.pad(a, ((0, b_pad - B), (0, 0)))

    out = pl.pallas_call(
        _mlp_kernel,
        out_shape=jax.ShapeDtypeStruct((b_pad, 1), jnp.float32),
        grid=(b_pad // tile_b,),
        in_specs=[
            # Batch-tiled activations: pipelined / double-buffered across grid steps.
            pl.BlockSpec((tile_b, state_dim), lambda i: (i, 0)),
            pl.BlockSpec((tile_b, action_dim), lambda i: (i, 0)),
            # Weights / biases: constant block index -> stay VMEM-resident.
            pl.BlockSpec((state_dim, h1p), lambda i: (0, 0)),
            pl.BlockSpec((action_dim, h1p), lambda i: (0, 0)),
            pl.BlockSpec((1, h1p), lambda i: (0, 0)),
            pl.BlockSpec((h1p, h2p), lambda i: (0, 0)),
            pl.BlockSpec((1, h2p), lambda i: (0, 0)),
            pl.BlockSpec((1, h2p), lambda i: (0, 0)),
            pl.BlockSpec((1, 1), lambda i: (0, 0)),
        ],
        # Last dim 1 equals the full array dim (legal block). Output traffic is only
        # 4*B bytes, so the masked-store epilogue here is negligible vs. the matmuls.
        out_specs=pl.BlockSpec((tile_b, 1), lambda i: (i, 0)),
        compiler_params=pltpu.CompilerParams(
            dimension_semantics=("parallel",)),
    )(s, a, w1s, w1a, b1, w2, b2, w3r, b3)
    return out[:B, 0]  # squeeze(-1), drop batch padding


def init_params(key, state_dim, action_dim, hidden_sizes=(64, 64)):
    """Deterministic PyTorch-style init: U(-1/sqrt(fan_in), 1/sqrt(fan_in))."""
    dims = [state_dim + action_dim] + list(hidden_sizes) + [1]
    params = []
    for i in range(len(dims) - 1):
        fan_in, fan_out = dims[i], dims[i + 1]
        key, kw, kb = jax.random.split(key, 3)
        bound = 1.0 / jnp.sqrt(jnp.float32(fan_in))
        w = jax.random.uniform(kw, (fan_in, fan_out), jnp.float32, -bound, bound)
        b = jax.random.uniform(kb, (1, fan_out), jnp.float32, -bound, bound)
        params.extend([w, b])
    return tuple(params)


def reference_forward(s, a, params):
    w1, b1, w2, b2, w3, b3 = params
    x = jnp.concatenate([s, a], axis=-1)
    h1 = jnp.maximum(x @ w1 + b1, 0.0)
    h2 = jnp.maximum(h1 @ w2 + b2, 0.0)
    return (h2 @ w3 + b3)[:, 0]


if __name__ == "__main__":
    state_dim, action_dim, batch = 16, 8, 8
    key = jax.random.PRNGKey(0)
    kp, ks, ka = jax.random.split(key, 3)
    params = init_params(kp, state_dim, action_dim, hidden_sizes=[64, 64])
    packed = pack_params(params, state_dim)
    s = jax.random.normal(ks, (batch, state_dim), jnp.float32)
    a = jax.random.normal(ka, (batch, action_dim), jnp.float32)

    out = reward_predictor_forward(s, a, packed)
    out = jax.block_until_ready(out)

    ref = reference_forward(s, a, params)
    assert out.shape == (batch,), out.shape
    # Small slack over f32 exactness: in-kernel MXU/VPU accumulation order differs
    # from the XLA reference (split W1 dots, padded K, VPU reduce in the last layer).
    assert jnp.allclose(out, ref, atol=1e-4, rtol=1e-3), (out, ref)
    print("KERNEL_OK")
</pallas_src>

<mosaic_0001>
module attributes {stable_mosaic.version = 11 : i64} {
  func.func @_mlp_kernel(%arg0: i32, %arg1: memref<256x16xf32, #tpu.memory_space<vmem>>, %arg2: memref<256x8xf32, #tpu.memory_space<vmem>>, %arg3: memref<16x128xf32, #tpu.memory_space<vmem>>, %arg4: memref<8x128xf32, #tpu.memory_space<vmem>>, %arg5: memref<1x128xf32, #tpu.memory_space<vmem>>, %arg6: memref<128x128xf32, #tpu.memory_space<vmem>>, %arg7: memref<1x128xf32, #tpu.memory_space<vmem>>, %arg8: memref<1x128xf32, #tpu.memory_space<vmem>>, %arg9: memref<1x1xf32, #tpu.memory_space<vmem>>, %arg10: memref<256x1xf32, #tpu.memory_space<vmem>>) attributes {dimension_semantics = [#tpu.dimension_semantics<parallel>], iteration_bounds = array<i64: 1>, scalar_prefetch = 0 : i64, scratch_operands = 0 : i64, tpu.core_type = #tpu.core_type<tc>, window_params = [{transform_indices = @transform_0, window_bounds = array<i64: 256, 16>}, {transform_indices = @transform_1, window_bounds = array<i64: 256, 8>}, {pipeline_mode = #tpu.pipeline_mode<synchronous>, transform_indices = @transform_2, window_bounds = array<i64: 16, 128>}, {pipeline_mode = #tpu.pipeline_mode<synchronous>, transform_indices = @transform_3, window_bounds = array<i64: 8, 128>}, {pipeline_mode = #tpu.pipeline_mode<synchronous>, transform_indices = @transform_4, window_bounds = array<i64: 1, 128>}, {pipeline_mode = #tpu.pipeline_mode<synchronous>, transform_indices = @transform_5, window_bounds = array<i64: 128, 128>}, {pipeline_mode = #tpu.pipeline_mode<synchronous>, transform_indices = @transform_6, window_bounds = array<i64: 1, 128>}, {pipeline_mode = #tpu.pipeline_mode<synchronous>, transform_indices = @transform_7, window_bounds = array<i64: 1, 128>}, {pipeline_mode = #tpu.pipeline_mode<synchronous>, transform_indices = @transform_8, window_bounds = array<i64: 1, 1>}, {transform_indices = @transform_9, window_bounds = array<i64: 256, 1>}]} {
    %c0 = arith.constant 0 : index
    %c0_0 = arith.constant 0 : index
    %0 = vector.load %arg1[%c0, %c0_0] : memref<256x16xf32, #tpu.memory_space<vmem>>, vector<256x16xf32>
    %c0_1 = arith.constant 0 : index
    %c0_2 = arith.constant 0 : index
    %1 = vector.load %arg3[%c0_1, %c0_2] : memref<16x128xf32, #tpu.memory_space<vmem>>, vector<16x128xf32>
    %cst = arith.constant dense<0.000000e+00> : vector<256x128xf32>
    %2 = tpu.matmul %0, %1, %cst {dimension_numbers = #tpu.dot_dimension_numbers<[1], [0], [0], [1], [0, 0, 1, 1], [], []>} : vector<256x16xf32>, vector<16x128xf32>, vector<256x128xf32> -> vector<256x128xf32>
    %c0_3 = arith.constant 0 : index
    %c0_4 = arith.constant 0 : index
    %3 = vector.load %arg2[%c0_3, %c0_4] : memref<256x8xf32, #tpu.memory_space<vmem>>, vector<256x8xf32>
    %c0_5 = arith.constant 0 : index
    %c0_6 = arith.constant 0 : index
    %4 = vector.load %arg4[%c0_5, %c0_6] : memref<8x128xf32, #tpu.memory_space<vmem>>, vector<8x128xf32>
    %cst_7 = arith.constant dense<0.000000e+00> : vector<256x128xf32>
    %5 = tpu.matmul %3, %4, %cst_7 {dimension_numbers = #tpu.dot_dimension_numbers<[1], [0], [0], [1], [0, 0, 1, 1], [], []>} : vector<256x8xf32>, vector<8x128xf32>, vector<256x128xf32> -> vector<256x128xf32>
    %6 = arith.addf %2, %5 : vector<256x128xf32>
    %c0_8 = arith.constant 0 : index
    %c0_9 = arith.constant 0 : index
    %7 = vector.load %arg5[%c0_8, %c0_9] : memref<1x128xf32, #tpu.memory_space<vmem>>, vector<1x128xf32>
    %8 = vector.broadcast %7 : vector<1x128xf32> to vector<256x128xf32>
    %9 = arith.addf %6, %8 : vector<256x128xf32>
    %cst_10 = arith.constant 0.000000e+00 : f32
    %10 = vector.broadcast %cst_10 : f32 to vector<256x128xf32>
    %11 = arith.maximumf %9, %10 : vector<256x128xf32>
    %c0_11 = arith.constant 0 : index
    %c0_12 = arith.constant 0 : index
    %12 = vector.load %arg6[%c0_11, %c0_12] : memref<128x128xf32, #tpu.memory_space<vmem>>, vector<128x128xf32>
    %cst_13 = arith.constant dense<0.000000e+00> : vector<256x128xf32>
    %13 = tpu.matmul %11, %12, %cst_13 {dimension_numbers = #tpu.dot_dimension_numbers<[1], [0], [0], [1], [0, 0, 1, 1], [], []>} : vector<256x128xf32>, vector<128x128xf32>, vector<256x128xf32> -> vector<256x128xf32>
    %c0_14 = arith.constant 0 : index
    %c0_15 = arith.constant 0 : index
    %14 = vector.load %arg7[%c0_14, %c0_15] : memref<1x128xf32, #tpu.memory_space<vmem>>, vector<1x128xf32>
    %15 = vector.broadcast %14 : vector<1x128xf32> to vector<256x128xf32>
    %16 = arith.addf %13, %15 : vector<256x128xf32>
    %cst_16 = arith.constant 0.000000e+00 : f32
    %17 = vector.broadcast %cst_16 : f32 to vector<256x128xf32>
    %18 = arith.maximumf %16, %17 : vector<256x128xf32>
    %c0_17 = arith.constant 0 : index
    %c0_18 = arith.constant 0 : index
    %19 = vector.load %arg8[%c0_17, %c0_18] : memref<1x128xf32, #tpu.memory_space<vmem>>, vector<1x128xf32>
    %20 = vector.broadcast %19 : vector<1x128xf32> to vector<256x128xf32>
    %21 = arith.mulf %18, %20 : vector<256x128xf32>
    %cst_19 = arith.constant dense<0.000000e+00> : vector<256xf32>
    %22 = vector.multi_reduction <add>, %21, %cst_19 [1] : vector<256x128xf32> to vector<256xf32>
    %23 = vector.shape_cast %22 : vector<256xf32> to vector<256x1xf32>
    %c0_20 = arith.constant 0 : index
    %c0_21 = arith.constant 0 : index
    %24 = vector.load %arg9[%c0_20, %c0_21] : memref<1x1xf32, #tpu.memory_space<vmem>>, vector<1x1xf32>
    %25 = vector.broadcast %24 : vector<1x1xf32> to vector<256x1xf32>
    %26 = arith.addf %23, %25 : vector<256x1xf32>
    %c0_22 = arith.constant 0 : index
    %c0_23 = arith.constant 0 : index
    %27 = vector.load %arg10[%c0_22, %c0_23] : memref<256x1xf32, #tpu.memory_space<vmem>>, vector<256x1xf32>
    tpu.vector_store %arg10[%c0_22, %c0_23], %26 {strides = array<i32>} : memref<256x1xf32, #tpu.memory_space<vmem>>, vector<256x1xf32>,
    return
  }
  func.func @transform_0(%arg0: i32) -> (i32, i32) {
    %c0_i32 = arith.constant 0 : i32
    %c0_i32_0 = arith.constant 0 : i32
    return %arg0, %c0_i32 : i32, i32
  }
  func.func @transform_1(%arg0: i32) -> (i32, i32) {
    %c0_i32 = arith.constant 0 : i32
    %c0_i32_0 = arith.constant 0 : i32
    return %arg0, %c0_i32 : i32, i32
  }
  func.func @transform_2(%arg0: i32) -> (i32, i32) {
    %c0_i32 = arith.constant 0 : i32
    %c0_i32_0 = arith.constant 0 : i32
    %c0_i32_1 = arith.constant 0 : i32
    return %c0_i32, %c0_i32_0 : i32, i32
  }
  func.func @transform_3(%arg0: i32) -> (i32, i32) {
    %c0_i32 = arith.constant 0 : i32
    %c0_i32_0 = arith.constant 0 : i32
    %c0_i32_1 = arith.constant 0 : i32
    return %c0_i32, %c0_i32_0 : i32, i32
  }
  func.func @transform_4(%arg0: i32) -> (i32, i32) {
    %c0_i32 = arith.constant 0 : i32
    %c0_i32_0 = arith.constant 0 : i32
    %c0_i32_1 = arith.constant 0 : i32
    return %c0_i32, %c0_i32_0 : i32, i32
  }
  func.func @transform_5(%arg0: i32) -> (i32, i32) {
    %c0_i32 = arith.constant 0 : i32
    %c0_i32_0 = arith.constant 0 : i32
    %c0_i32_1 = arith.constant 0 : i32
    return %c0_i32, %c0_i32_0 : i32, i32
  }
  func.func @transform_6(%arg0: i32) -> (i32, i32) {
    %c0_i32 = arith.constant 0 : i32
    %c0_i32_0 = arith.constant 0 : i32
    %c0_i32_1 = arith.constant 0 : i32
    return %c0_i32, %c0_i32_0 : i32, i32
  }
  func.func @transform_7(%arg0: i32) -> (i32, i32) {
    %c0_i32 = arith.constant 0 : i32
    %c0_i32_0 = arith.constant 0 : i32
    %c0_i32_1 = arith.constant 0 : i32
    return %c0_i32, %c0_i32_0 : i32, i32
  }
  func.func @transform_8(%arg0: i32) -> (i32, i32) {
    %c0_i32 = arith.constant 0 : i32
    %c0_i32_0 = arith.constant 0 : i32
    %c0_i32_1 = arith.constant 0 : i32
    return %c0_i32, %c0_i32_0 : i32, i32
  }
  func.func @transform_9(%arg0: i32) -> (i32, i32) {
    %c0_i32 = arith.constant 0 : i32
    %c0_i32_0 = arith.constant 0 : i32
    return %arg0, %c0_i32 : i32, i32
  }
}

</mosaic_0001>

<llo_original>
// kernel: tpu_custom_call.1
$region0: #{tpu_custom_call.1}
  #allocation0 [shape = 'u32[]', space=smem, size = 0x4, offset = 0x4, fixed_abs, tag = 'smem constant byte address 0x4 - core index']
  #allocation1 [shape = 'u32[144,128]{1,0:T(1,128)}', space=vmem, size = 0x12000, scoped, tag = 'internal scratch']
  #allocation2 [shape = 'f32[1,1]{1,0:T(1,128)S(1)}', space=vmem, size = 0x200, scoped, tag = 'scoped memory for tpu_custom_call.1']
  %s0 = inlined_call_operand.vmem [shape: f32[256,16], index: 0, kind: input, shape index: {}]
  %s1 = inlined_call_operand.vmem [shape: f32[256,8], index: 1, kind: input, shape index: {}]
  %s2 = inlined_call_operand.vmem [shape: f32[16,128], index: 2, kind: input, shape index: {}]
  %s3 = inlined_call_operand.vmem [shape: f32[8,128], index: 3, kind: input, shape index: {}]
  %s4 = inlined_call_operand.vmem [shape: f32[1,128], index: 4, kind: input, shape index: {}]
  %s5 = inlined_call_operand.vmem [shape: f32[128,128], index: 5, kind: input, shape index: {}]
  %s6 = inlined_call_operand.vmem [shape: f32[1,128], index: 6, kind: input, shape index: {}]
  %s7 = inlined_call_operand.vmem [shape: f32[1,128], index: 7, kind: input, shape index: {}]
  %s8 = inlined_call_operand.<no memory space> [shape: f32[1,1], index: 8, kind: input, shape index: {}]
  %s9 = inlined_call_operand.vmem [shape: f32[256,1], index: 9, kind: output, shape index: {}]
  %s10 = sld [smem:[#allocation0]]
  $region46: #{tpu_custom_call.1} parent=0
    _
  %s12 = ssub.s32 1, %s10
  %s13 = scalar_select 0, %s12, %s10
  %v14 = vstv %s8
  %15 = vst [vmem:[#allocation2] sm:$0x1] %v14
  // Predicated region
  $region2: #{tpu_custom_call.1} parent=0 // pred_check
    _
  $region3: #{tpu_custom_call.1} parent=0 // pred_check_branch
    %17 = sbr.rel (0) target = $region5
  $region4: #{tpu_custom_call.1} parent=0 // pred_region
    _
  $region5: #{tpu_custom_call.1} parent=0 // pred_fallthru
    _
  // Predicated region
  $region6: #{tpu_custom_call.1} parent=0 // pred_check
    _
  $region7: #{tpu_custom_call.1} parent=0 // pred_check_branch
    %19 = sbr.rel (0) target = $region9
  $region8: #{tpu_custom_call.1} parent=0 // pred_region
    _
  $region9: #{tpu_custom_call.1} parent=0 // pred_fallthru
    _
  // Predicated region
  $region10: #{tpu_custom_call.1} parent=0 // pred_check
    _
  $region11: #{tpu_custom_call.1} parent=0 // pred_check_branch
    %21 = sbr.rel (0) target = $region13
  $region12: #{tpu_custom_call.1} parent=0 // pred_region
    _
  $region13: #{tpu_custom_call.1} parent=0 // pred_fallthru
    _
  // Predicated region
  $region14: #{tpu_custom_call.1} parent=0 // pred_check
    _
  $region15: #{tpu_custom_call.1} parent=0 // pred_check_branch
    %23 = sbr.rel (0) target = $region17
  $region16: #{tpu_custom_call.1} parent=0 // pred_region
    _
  $region17: #{tpu_custom_call.1} parent=0 // pred_fallthru
    _
  // Predicated region
  $region18: #{tpu_custom_call.1} parent=0 // pred_check
    _
  $region19: #{tpu_custom_call.1} parent=0 // pred_check_branch
    %25 = sbr.rel (0) target = $region21
  $region20: #{tpu_custom_call.1} parent=0 // pred_region
    _
  $region21: #{tpu_custom_call.1} parent=0 // pred_fallthru
    _
  // Predicated region
  $region22: #{tpu_custom_call.1} parent=0 // pred_check
    _
  $region23: #{tpu_custom_call.1} parent=0 // pred_check_branch
    %27 = sbr.rel (0) target = $region25
  $region24: #{tpu_custom_call.1} parent=0 // pred_region
    _
  $region25: #{tpu_custom_call.1} parent=0 // pred_fallthru
    _
  // Predicated region
  $region26: #{tpu_custom_call.1} parent=0 // pred_check
    _
  $region27: #{tpu_custom_call.1} parent=0 // pred_check_branch
    %29 = sbr.rel (0) target = $region29
  $region28: #{tpu_custom_call.1} parent=0 // pred_region
    _
  $region29: #{tpu_custom_call.1} parent=0 // pred_fallthru
    _
  // Predicated region
  $region30: #{tpu_custom_call.1} parent=0 // pred_check
    _
  $region31: #{tpu_custom_call.1} parent=0 // pred_check_branch
    %31 = sbr.rel (0) target = $region33
  $region32: #{tpu_custom_call.1} parent=0 // pred_region
    _
  $region33: #{tpu_custom_call.1} parent=0 // pred_fallthru
    _
  // Predicated region
  $region34: #{tpu_custom_call.1} parent=0 // pred_check
    _
  $region35: #{tpu_custom_call.1} parent=0 // pred_check_branch
    %33 = sbr.rel (0) target = $region37
  $region36: #{tpu_custom_call.1} parent=0 // pred_region
    _
  $region37: #{tpu_custom_call.1} parent=0 // pred_fallthru
    _
  %v34 = vld [vmem:[%s0] sm:$0xff]
  %v35 = vld [vmem:[%s0 + $0x8] sm:$0xff]
  %v36 = vld [vmem:[%s0 + $0x10] sm:$0xff]
  %v37 = vld [vmem:[%s0 + $0x18] sm:$0xff]
  %v38 = vld [vmem:[%s0 + $0x20] sm:$0xff]
  %v39 = vld [vmem:[%s0 + $0x28] sm:$0xff]
  %v40 = vld [vmem:[%s0 + $0x30] sm:$0xff]
  %v41 = vld [vmem:[%s0 + $0x38] sm:$0xff]
  %v42 = vld [vmem:[%s0 + $0x40] sm:$0xff]
  %v43 = vld [vmem:[%s0 + $0x48] sm:$0xff]
  %v44 = vld [vmem:[%s0 + $0x50] sm:$0xff]
  %v45 = vld [vmem:[%s0 + $0x58] sm:$0xff]
  %v46 = vld [vmem:[%s0 + $0x60] sm:$0xff]
  %v47 = vld [vmem:[%s0 + $0x68] sm:$0xff]
  %v48 = vld [vmem:[%s0 + $0x70] sm:$0xff]
  %v49 = vld [vmem:[%s0 + $0x78] sm:$0xff]
  %v50 = vld [vmem:[%s0 + $0x80] sm:$0xff]
  %v51 = vld [vmem:[%s0 + $0x88] sm:$0xff]
  %v52 = vld [vmem:[%s0 + $0x90] sm:$0xff]
  %v53 = vld [vmem:[%s0 + $0x98] sm:$0xff]
  %v54 = vld [vmem:[%s0 + $0xa0] sm:$0xff]
  %v55 = vld [vmem:[%s0 + $0xa8] sm:$0xff]
  %v56 = vld [vmem:[%s0 + $0xb0] sm:$0xff]
  %v57 = vld [vmem:[%s0 + $0xb8] sm:$0xff]
  %v58 = vld [vmem:[%s0 + $0xc0] sm:$0xff]
  %v59 = vld [vmem:[%s0 + $0xc8] sm:$0xff]
  %v60 = vld [vmem:[%s0 + $0xd0] sm:$0xff]
  %v61 = vld [vmem:[%s0 + $0xd8] sm:$0xff]
  %v62 = vld [vmem:[%s0 + $0xe0] sm:$0xff]
  %v63 = vld [vmem:[%s0 + $0xe8] sm:$0xff]
  %v64 = vld [vmem:[%s0 + $0xf0] sm:$0xff]
  %v65 = vld [vmem:[%s0 + $0xf8] sm:$0xff]
  %v66 = vld [vmem:[%s2] sm:$0xff]
  %v67 = vld [vmem:[%s2 + $0x8] sm:$0xff]
  %v68 = vld [vmem:[%s1] sm:$0xff]
  %v69 = vld [vmem:[%s1 + $0x8] sm:$0xff]
  %v70 = vld [vmem:[%s1 + $0x10] sm:$0xff]
  %v71 = vld [vmem:[%s1 + $0x18] sm:$0xff]
  %v72 = vld [vmem:[%s1 + $0x20] sm:$0xff]
  %v73 = vld [vmem:[%s1 + $0x28] sm:$0xff]
  %v74 = vld [vmem:[%s1 + $0x30] sm:$0xff]
  %v75 = vld [vmem:[%s1 + $0x38] sm:$0xff]
  %v76 = vld [vmem:[%s1 + $0x40] sm:$0xff]
  %v77 = vld [vmem:[%s1 + $0x48] sm:$0xff]
  %v78 = vld [vmem:[%s1 + $0x50] sm:$0xff]
  %v79 = vld [vmem:[%s1 + $0x58] sm:$0xff]
  %v80 = vld [vmem:[%s1 + $0x60] sm:$0xff]
  %v81 = vld [vmem:[%s1 + $0x68] sm:$0xff]
  %v82 = vld [vmem:[%s1 + $0x70] sm:$0xff]
  %v83 = vld [vmem:[%s1 + $0x78] sm:$0xff]
  %v84 = vld [vmem:[%s1 + $0x80] sm:$0xff]
  %v85 = vld [vmem:[%s1 + $0x88] sm:$0xff]
  %v86 = vld [vmem:[%s1 + $0x90] sm:$0xff]
  %v87 = vld [vmem:[%s1 + $0x98] sm:$0xff]
  %v88 = vld [vmem:[%s1 + $0xa0] sm:$0xff]
  %v89 = vld [vmem:[%s1 + $0xa8] sm:$0xff]
  %v90 = vld [vmem:[%s1 + $0xb0] sm:$0xff]
  %v91 = vld [vmem:[%s1 + $0xb8] sm:$0xff]
  %v92 = vld [vmem:[%s1 + $0xc0] sm:$0xff]
  %v93 = vld [vmem:[%s1 + $0xc8] sm:$0xff]
  %v94 = vld [vmem:[%s1 + $0xd0] sm:$0xff]
  %v95 = vld [vmem:[%s1 + $0xd8] sm:$0xff]
  %v96 = vld [vmem:[%s1 + $0xe0] sm:$0xff]
  %v97 = vld [vmem:[%s1 + $0xe8] sm:$0xff]
  %v98 = vld [vmem:[%s1 + $0xf0] sm:$0xff]
  %v99 = vld [vmem:[%s1 + $0xf8] sm:$0xff]
  %v100 = vld [vmem:[%s3] sm:$0xff]
  %vm101 = vcmask 64512
  %v103 = vsel %vm101, %v68, 0
  %v106 = vsel %vm101, %v69, 0
  %v109 = vsel %vm101, %v70, 0
  %v112 = vsel %vm101, %v71, 0
  %v115 = vsel %vm101, %v72, 0
  %v118 = vsel %vm101, %v73, 0
  %v121 = vsel %vm101, %v74, 0
  %v124 = vsel %vm101, %v75, 0
  %v127 = vsel %vm101, %v76, 0
  %v130 = vsel %vm101, %v77, 0
  %v133 = vsel %vm101, %v78, 0
  %v136 = vsel %vm101, %v79, 0
  %v139 = vsel %vm101, %v80, 0
  %v142 = vsel %vm101, %v81, 0
  %v145 = vsel %vm101, %v82, 0
  %v148 = vsel %vm101, %v83, 0
  %v151 = vsel %vm101, %v84, 0
  %v154 = vsel %vm101, %v85, 0
  %v157 = vsel %vm101, %v86, 0
  %v160 = vsel %vm101, %v87, 0
  %v163 = vsel %vm101, %v88, 0
  %v166 = vsel %vm101, %v89, 0
  %v169 = vsel %vm101, %v90, 0
  %v172 = vsel %vm101, %v91, 0
  %v175 = vsel %vm101, %v92, 0
  %v178 = vsel %vm101, %v93, 0
  %v181 = vsel %vm101, %v94, 0
  %v184 = vsel %vm101, %v95, 0
  %v187 = vsel %vm101, %v96, 0
  %v190 = vsel %vm101, %v97, 0
  %v193 = vsel %vm101, %v98, 0
  %v196 = vsel %vm101, %v99, 0
  %198 = vmatprep.subr.mxu0 0.0
  %199 = vmatpush1.msra.mxu0 %v100
  %200 = vmatprep.subr.mxu0 0.0
  %201 = vmatpush1.msra.mxu0 0.0
  %202 = vmatprep.subr.mxu0 0.0
  %203 = vmatpush1.msra.mxu0 0.0
  %204 = vmatprep.subr.mxu0 0.0
  %205 = vmatpush1.msra.mxu0 0.0
  %206 = vmatprep.subr.mxu0 0.0
  %207 = vmatpush1.msra.mxu0 0.0
  %208 = vmatprep.subr.mxu0 0.0
  %209 = vmatpush1.msra.mxu0 0.0
  %210 = vmatprep.subr.mxu0 0.0
  %211 = vmatpush1.msra.mxu0 0.0
  %212 = vmatprep.subr.mxu0 0.0
  %213 = vmatpush1.msra.mxu0 0.0
  %214 = vmatprep.subr.mxu0 0.0
  %215 = vmatpush1.msra.mxu0 0.0
  %216 = vmatprep.subr.mxu0 0.0
  %217 = vmatpush1.msra.mxu0 0.0
  %218 = vmatprep.subr.mxu0 0.0
  %219 = vmatpush1.msra.mxu0 0.0
  %220 = vmatprep.subr.mxu0 0.0
  %221 = vmatpush1.msra.mxu0 0.0
  %222 = vmatprep.subr.mxu0 0.0
  %223 = vmatpush1.msra.mxu0 0.0
  %224 = vmatprep.subr.mxu0 0.0
  %225 = vmatpush1.msra.mxu0 0.0
  %226 = vmatprep.subr.mxu0 0.0
  %227 = vmatpush1.msra.mxu0 0.0
  %228 = vmatprep.subr.mxu0 0.0
  %229 = vmatpush1.msra.mxu0 0.0
  %230 = vmatprep.subr.mxu0 0.0
  %231 = vmatpush1.msra.mxu0 0.0
  %232 = vmatprep.subr.mxu0 0.0
  %233 = vmatpush1.msra.mxu0 0.0
  %234 = vmatprep.subr.mxu0 0.0
  %235 = vmatpush1.msra.mxu0 0.0
  %236 = vmatprep.subr.mxu0 0.0
  %237 = vmatpush1.msra.mxu0 0.0
  %238 = vmatprep.subr.mxu0 0.0
  %239 = vmatpush1.msra.mxu0 0.0
  %240 = vmatprep.subr.mxu0 0.0
  %241 = vmatpush1.msra.mxu0 0.0
  %242 = vmatprep.subr.mxu0 0.0
  %243 = vmatpush1.msra.mxu0 0.0
  %244 = vmatprep.subr.mxu0 0.0
  %245 = vmatpush1.msra.mxu0 0.0
  %246 = vmatprep.subr.mxu0 0.0
  %247 = vmatpush1.msra.mxu0 0.0
  %248 = vmatprep.subr.mxu0 0.0
  %249 = vmatpush1.msra.mxu0 0.0
  %250 = vmatprep.subr.mxu0 0.0
  %251 = vmatpush1.msra.mxu0 0.0
  %252 = vmatprep.subr.mxu0 0.0
  %253 = vmatpush1.msra.mxu0 0.0
  %254 = vmatprep.subr.mxu0 0.0
  %255 = vmatpush1.msra.mxu0 0.0
  %256 = vmatprep.subr.mxu0 0.0
  %257 = vmatpush1.msra.mxu0 0.0
  %258 = vmatprep.subr.mxu0 0.0
  %259 = vmatpush1.msra.mxu0 0.0
  %260 = vmatprep.subr.mxu0 0.0
  %261 = vmatpush1.msra.mxu0 0.0
  %262 = vmatprep.mubr.f32.mxu0 0.0
  %263 = vmatmul.mubr.f32.gmra.mrb[0].mxu0 %v103
  %v264 = vpop.f32.mrb[0].mxu0
  %v265 = vadd.f32 0.0, %v264
  %v266 = vpop.f32.mrb[0].mxu0
  %267 = vmatprep.mubr.f32.mxu0 0.0
  %268 = vmatmul.mubr.f32.gmra.mrb[0].mxu0 %v106
  %v269 = vpop.f32.mrb[0].mxu0
  %v270 = vadd.f32 0.0, %v269
  %v271 = vpop.f32.mrb[0].mxu0
  %272 = vmatprep.mubr.f32.mxu0 0.0
  %273 = vmatmul.mubr.f32.gmra.mrb[0].mxu0 %v109
  %v274 = vpop.f32.mrb[0].mxu0
  %v275 = vadd.f32 0.0, %v274
  %v276 = vpop.f32.mrb[0].mxu0
  %277 = vmatprep.mubr.f32.mxu0 0.0
  %278 = vmatmul.mubr.f32.gmra.mrb[0].mxu0 %v112
  %v279 = vpop.f32.mrb[0].mxu0
  %v280 = vadd.f32 0.0, %v279
  %v281 = vpop.f32.mrb[0].mxu0
  %282 = vmatprep.mubr.f32.mxu0 0.0
  %283 = vmatmul.mubr.f32.gmra.mrb[0].mxu0 %v115
  %v284 = vpop.f32.mrb[0].mxu0
  %v285 = vadd.f32 0.0, %v284
  %v286 = vpop.f32.mrb[0].mxu0
  %287 = vmatprep.mubr.f32.mxu0 0.0
  %288 = vmatmul.mubr.f32.gmra.mrb[0].mxu0 %v118
  %v289 = vpop.f32.mrb[0].mxu0
  %v290 = vadd.f32 0.0, %v289
  %v291 = vpop.f32.mrb[0].mxu0
  %292 = vmatprep.mubr.f32.mxu0 0.0
  %293 = vmatmul.mubr.f32.gmra.mrb[0].mxu0 %v121
  %v294 = vpop.f32.mrb[0].mxu0
  %v295 = vadd.f32 0.0, %v294
  %v296 = vpop.f32.mrb[0].mxu0
  %297 = vmatprep.mubr.f32.mxu0 0.0
  %298 = vmatmul.mubr.f32.gmra.mrb[0].mxu0 %v124
  %v299 = vpop.f32.mrb[0].mxu0
  %v300 = vadd.f32 0.0, %v299
  %v301 = vpop.f32.mrb[0].mxu0
  %302 = vmatprep.mubr.f32.mxu0 0.0
  %303 = vmatmul.mubr.f32.gmra.mrb[0].mxu0 %v127
  %v304 = vpop.f32.mrb[0].mxu0
  %v305 = vadd.f32 0.0, %v304
  %v306 = vpop.f32.mrb[0].mxu0
  %307 = vmatprep.mubr.f32.mxu0 0.0
  %308 = vmatmul.mubr.f32.gmra.mrb[0].mxu0 %v130
  %v309 = vpop.f32.mrb[0].mxu0
  %v310 = vadd.f32 0.0, %v309
  %v311 = vpop.f32.mrb[0].mxu0
  %312 = vmatprep.mubr.f32.mxu0 0.0
  %313 = vmatmul.mubr.f32.gmra.mrb[0].mxu0 %v133
  %v314 = vpop.f32.mrb[0].mxu0
  %v315 = vadd.f32 0.0, %v314
  %v316 = vpop.f32.mrb[0].mxu0
  %317 = vmatprep.mubr.f32.mxu0 0.0
  %318 = vmatmul.mubr.f32.gmra.mrb[0].mxu0 %v136
  %v319 = vpop.f32.mrb[0].mxu0
  %v320 = vadd.f32 0.0, %v319
  %v321 = vpop.f32.mrb[0].mxu0
  %322 = vmatprep.mubr.f32.mxu0 0.0
  %323 = vmatmul.mubr.f32.gmra.mrb[0].mxu0 %v139
  %v324 = vpop.f32.mrb[0].mxu0
  %v325 = vadd.f32 0.0, %v324
  %v326 = vpop.f32.mrb[0].mxu0
  %327 = vmatprep.mubr.f32.mxu0 0.0
  %328 = vmatmul.mubr.f32.gmra.mrb[0].mxu0 %v142
  %v329 = vpop.f32.mrb[0].mxu0
  %v330 = vadd.f32 0.0, %v329
  %v331 = vpop.f32.mrb[0].mxu0
  %332 = vmatprep.mubr.f32.mxu0 0.0
  %333 = vmatmul.mubr.f32.gmra.mrb[0].mxu0 %v145
  %v334 = vpop.f32.mrb[0].mxu0
  %v335 = vadd.f32 0.0, %v334
  %v336 = vpop.f32.mrb[0].mxu0
  %337 = vmatprep.mubr.f32.mxu0 0.0
  %338 = vmatmul.mubr.f32.gmra.mrb[0].mxu0 %v148
  %v339 = vpop.f32.mrb[0].mxu0
  %v340 = vadd.f32 0.0, %v339
  %v341 = vpop.f32.mrb[0].mxu0
  %342 = vmatprep.mubr.f32.mxu0 0.0
  %343 = vmatmul.mubr.f32.gmra.mrb[0].mxu0 %v151
  %v344 = vpop.f32.mrb[0].mxu0
  %v345 = vadd.f32 0.0, %v344
  %v346 = vpop.f32.mrb[0].mxu0
  %347 = vmatprep.mubr.f32.mxu0 0.0
  %348 = vmatmul.mubr.f32.gmra.mrb[0].mxu0 %v154
  %v349 = vpop.f32.mrb[0].mxu0
  %v350 = vadd.f32 0.0, %v349
  %v351 = vpop.f32.mrb[0].mxu0
  %352 = vmatprep.mubr.f32.mxu0 0.0
  %353 = vmatmul.mubr.f32.gmra.mrb[0].mxu0 %v157
  %v354 = vpop.f32.mrb[0].mxu0
  %v355 = vadd.f32 0.0, %v354
  %v356 = vpop.f32.mrb[0].mxu0
  %357 = vmatprep.mubr.f32.mxu0 0.0
  %358 = vmatmul.mubr.f32.gmra.mrb[0].mxu0 %v160
  %v359 = vpop.f32.mrb[0].mxu0
  %v360 = vadd.f32 0.0, %v359
  %v361 = vpop.f32.mrb[0].mxu0
  %362 = vmatprep.mubr.f32.mxu0 0.0
  %363 = vmatmul.mubr.f32.gmra.mrb[0].mxu0 %v163
  %v364 = vpop.f32.mrb[0].mxu0
  %v365 = vadd.f32 0.0, %v364
  %v366 = vpop.f32.mrb[0].mxu0
  %367 = vmatprep.mubr.f32.mxu0 0.0
  %368 = vmatmul.mubr.f32.gmra.mrb[0].mxu0 %v166
  %v369 = vpop.f32.mrb[0].mxu0
  %v370 = vadd.f32 0.0, %v369
  %v371 = vpop.f32.mrb[0].mxu0
  %372 = vmatprep.mubr.f32.mxu0 0.0
  %373 = vmatmul.mubr.f32.gmra.mrb[0].mxu0 %v169
  %v374 = vpop.f32.mrb[0].mxu0
  %v375 = vadd.f32 0.0, %v374
  %v376 = vpop.f32.mrb[0].mxu0
  %377 = vmatprep.mubr.f32.mxu0 0.0
  %378 = vmatmul.mubr.f32.gmra.mrb[0].mxu0 %v172
  %v379 = vpop.f32.mrb[0].mxu0
  %v380 = vadd.f32 0.0, %v379
  %v381 = vpop.f32.mrb[0].mxu0
  %382 = vmatprep.mubr.f32.mxu0 0.0
  %383 = vmatmul.mubr.f32.gmra.mrb[0].mxu0 %v175
  %v384 = vpop.f32.mrb[0].mxu0
  %v385 = vadd.f32 0.0, %v384
  %v386 = vpop.f32.mrb[0].mxu0
  %387 = vmatprep.mubr.f32.mxu0 0.0
  %388 = vmatmul.mubr.f32.gmra.mrb[0].mxu0 %v178
  %v389 = vpop.f32.mrb[0].mxu0
  %v390 = vadd.f32 0.0, %v389
  %v391 = vpop.f32.mrb[0].mxu0
  %392 = vmatprep.mubr.f32.mxu0 0.0
  %393 = vmatmul.mubr.f32.gmra.mrb[0].mxu0 %v181
  %v394 = vpop.f32.mrb[0].mxu0
  %v395 = vadd.f32 0.0, %v394
  %v396 = vpop.f32.mrb[0].mxu0
  %397 = vmatprep.mubr.f32.mxu0 0.0
  %398 = vmatmul.mubr.f32.gmra.mrb[0].mxu0 %v184
  %v399 = vpop.f32.mrb[0].mxu0
  %v400 = vadd.f32 0.0, %v399
  %v401 = vpop.f32.mrb[0].mxu0
  %402 = vmatprep.mubr.f32.mxu0 0.0
  %403 = vmatmul.mubr.f32.gmra.mrb[0].mxu0 %v187
  %v404 = vpop.f32.mrb[0].mxu0
  %v405 = vadd.f32 0.0, %v404
  %v406 = vpop.f32.mrb[0].mxu0
  %407 = vmatprep.mubr.f32.mxu0 0.0
  %408 = vmatmul.mubr.f32.gmra.mrb[0].mxu0 %v190
  %v409 = vpop.f32.mrb[0].mxu0
  %v410 = vadd.f32 0.0, %v409
  %v411 = vpop.f32.mrb[0].mxu0
  %412 = vmatprep.mubr.f32.mxu0 0.0
  %413 = vmatmul.mubr.f32.gmra.mrb[0].mxu0 %v193
  %v414 = vpop.f32.mrb[0].mxu0
  %v415 = vadd.f32 0.0, %v414
  %v416 = vpop.f32.mrb[0].mxu0
  %417 = vmatprep.mubr.f32.mxu0 0.0
  %418 = vmatmul.mubr.f32.gmra.mrb[0].mxu0 %v196
  %v419 = vpop.f32.mrb[0].mxu0
  %v420 = vadd.f32 0.0, %v419
  %v421 = vpop.f32.mrb[0].mxu0
  %422 = vdwg.mxu0
  %vm423 = vcmask 130048
  %v425 = vsel %vm423, %v34, 0
  %v428 = vsel %vm423, %v35, 0
  %v431 = vsel %vm423, %v36, 0
  %v434 = vsel %vm423, %v37, 0
  %v437 = vsel %vm423, %v38, 0
  %v440 = vsel %vm423, %v39, 0
  %v443 = vsel %vm423, %v40, 0
  %v446 = vsel %vm423, %v41, 0
  %v449 = vsel %vm423, %v42, 0
  %v452 = vsel %vm423, %v43, 0
  %v455 = vsel %vm423, %v44, 0
  %v458 = vsel %vm423, %v45, 0
  %v461 = vsel %vm423, %v46, 0
  %v464 = vsel %vm423, %v47, 0
  %v467 = vsel %vm423, %v48, 0
  %v470 = vsel %vm423, %v49, 0
  %v473 = vsel %vm423, %v50, 0
  %v476 = vsel %vm423, %v51, 0
  %v479 = vsel %vm423, %v52, 0
  %v482 = vsel %vm423, %v53, 0
  %v485 = vsel %vm423, %v54, 0
  %v488 = vsel %vm423, %v55, 0
  %v491 = vsel %vm423, %v56, 0
  %v494 = vsel %vm423, %v57, 0
  %v497 = vsel %vm423, %v58, 0
  %v500 = vsel %vm423, %v59, 0
  %v503 = vsel %vm423, %v60, 0
  %v506 = vsel %vm423, %v61, 0
  %v509 = vsel %vm423, %v62, 0
  %v512 = vsel %vm423, %v63, 0
  %v515 = vsel %vm423, %v64, 0
  %v518 = vsel %vm423, %v65, 0
  %520 = vmatprep.subr.mxu0 0.0
  %521 = vmatpush1.msra.mxu0 %v66
  %522 = vmatprep.subr.mxu0 0.0
  %523 = vmatpush1.msra.mxu0 %v67
  %524 = vmatprep.subr.mxu0 0.0
  %525 = vmatpush1.msra.mxu0 0.0
  %526 = vmatprep.subr.mxu0 0.0
  %527 = vmatpush1.msra.mxu0 0.0
  %528 = vmatprep.subr.mxu0 0.0
  %529 = vmatpush1.msra.mxu0 0.0
  %530 = vmatprep.subr.mxu0 0.0
  %531 = vmatpush1.msra.mxu0 0.0
  %532 = vmatprep.subr.mxu0 0.0
  %533 = vmatpush1.msra.mxu0 0.0
  %534 = vmatprep.subr.mxu0 0.0
  %535 = vmatpush1.msra.mxu0 0.0
  %536 = vmatprep.subr.mxu0 0.0
  %537 = vmatpush1.msra.mxu0 0.0
  %538 = vmatprep.subr.mxu0 0.0
  %539 = vmatpush1.msra.mxu0 0.0
  %540 = vmatprep.subr.mxu0 0.0
  %541 = vmatpush1.msra.mxu0 0.0
  %542 = vmatprep.subr.mxu0 0.0
  %543 = vmatpush1.msra.mxu0 0.0
  %544 = vmatprep.subr.mxu0 0.0
  %545 = vmatpush1.msra.mxu0 0.0
  %546 = vmatprep.subr.mxu0 0.0
  %547 = vmatpush1.msra.mxu0 0.0
  %548 = vmatprep.subr.mxu0 0.0
  %549 = vmatpush1.msra.mxu0 0.0
  %550 = vmatprep.subr.mxu0 0.0
  %551 = vmatpush1.msra.mxu0 0.0
  %552 = vmatprep.subr.mxu0 0.0
  %553 = vmatpush1.msra.mxu0 0.0
  %554 = vmatprep.subr.mxu0 0.0
  %555 = vmatpush1.msra.mxu0 0.0
  %556 = vmatprep.subr.mxu0 0.0
  %557 = vmatpush1.msra.mxu0 0.0
  %558 = vmatprep.subr.mxu0 0.0
  %559 = vmatpush1.msra.mxu0 0.0
  %560 = vmatprep.subr.mxu0 0.0
  %561 = vmatpush1.msra.mxu0 0.0
  %562 = vmatprep.subr.mxu0 0.0
  %563 = vmatpush1.msra.mxu0 0.0
  %564 = vmatprep.subr.mxu0 0.0
  %565 = vmatpush1.msra.mxu0 0.0
  %566 = vmatprep.subr.mxu0 0.0
  %567 = vmatpush1.msra.mxu0 0.0
  %568 = vmatprep.subr.mxu0 0.0
  %569 = vmatpush1.msra.mxu0 0.0
  %570 = vmatprep.subr.mxu0 0.0
  %571 = vmatpush1.msra.mxu0 0.0
  %572 = vmatprep.subr.mxu0 0.0
  %573 = vmatpush1.msra.mxu0 0.0
  %574 = vmatprep.subr.mxu0 0.0
  %575 = vmatpush1.msra.mxu0 0.0
  %576 = vmatprep.subr.mxu0 0.0
  %577 = vmatpush1.msra.mxu0 0.0
  %578 = vmatprep.subr.mxu0 0.0
  %579 = vmatpush1.msra.mxu0 0.0
  %580 = vmatprep.subr.mxu0 0.0
  %581 = vmatpush1.msra.mxu0 0.0
  %582 = vmatprep.subr.mxu0 0.0
  %583 = vmatpush1.msra.mxu0 0.0
  %584 = vmatprep.mubr.f32.mxu0 0.0
  %585 = vmatmul.mubr.f32.gmra.mrb[0].mxu0 %v425
  %v586 = vpop.f32.mrb[0].mxu0
  %v587 = vadd.f32 %v265, %v586
  %v588 = vpop.f32.mrb[0].mxu0
  %589 = vmatprep.mubr.f32.mxu0 0.0
  %590 = vmatmul.mubr.f32.gmra.mrb[0].mxu0 %v428
  %v591 = vpop.f32.mrb[0].mxu0
  %v592 = vadd.f32 %v270, %v591
  %v593 = vpop.f32.mrb[0].mxu0
  %594 = vmatprep.mubr.f32.mxu0 0.0
  %595 = vmatmul.mubr.f32.gmra.mrb[0].mxu0 %v431
  %v596 = vpop.f32.mrb[0].mxu0
  %v597 = vadd.f32 %v275, %v596
  %v598 = vpop.f32.mrb[0].mxu0
  %599 = vmatprep.mubr.f32.mxu0 0.0
  %600 = vmatmul.mubr.f32.gmra.mrb[0].mxu0 %v434
  %v601 = vpop.f32.mrb[0].mxu0
  %v602 = vadd.f32 %v280, %v601
  %v603 = vpop.f32.mrb[0].mxu0
  %604 = vmatprep.mubr.f32.mxu0 0.0
  %605 = vmatmul.mubr.f32.gmra.mrb[0].mxu0 %v437
  %v606 = vpop.f32.mrb[0].mxu0
  %v607 = vadd.f32 %v285, %v606
  %v608 = vpop.f32.mrb[0].mxu0
  %609 = vmatprep.mubr.f32.mxu0 0.0
  %610 = vmatmul.mubr.f32.gmra.mrb[0].mxu0 %v440
  %v611 = vpop.f32.mrb[0].mxu0
  %v612 = vadd.f32 %v290, %v611
  %v613 = vpop.f32.mrb[0].mxu0
  %614 = vmatprep.mubr.f32.mxu0 0.0
  %615 = vmatmul.mubr.f32.gmra.mrb[0].mxu0 %v443
  %v616 = vpop.f32.mrb[0].mxu0
  %v617 = vadd.f32 %v295, %v616
  %v618 = vpop.f32.mrb[0].mxu0
  %619 = vmatprep.mubr.f32.mxu0 0.0
  %620 = vmatmul.mubr.f32.gmra.mrb[0].mxu0 %v446
  %v621 = vpop.f32.mrb[0].mxu0
  %v622 = vadd.f32 %v300, %v621
  %v623 = vpop.f32.mrb[0].mxu0
  %624 = vmatprep.mubr.f32.mxu0 0.0
  %625 = vmatmul.mubr.f32.gmra.mrb[0].mxu0 %v449
  %v626 = vpop.f32.mrb[0].mxu0
  %v627 = vadd.f32 %v305, %v626
  %v628 = vpop.f32.mrb[0].mxu0
  %629 = vmatprep.mubr.f32.mxu0 0.0
  %630 = vmatmul.mubr.f32.gmra.mrb[0].mxu0 %v452
  %v631 = vpop.f32.mrb[0].mxu0
  %v632 = vadd.f32 %v310, %v631
  %v633 = vpop.f32.mrb[0].mxu0
  %634 = vmatprep.mubr.f32.mxu0 0.0
  %635 = vmatmul.mubr.f32.gmra.mrb[0].mxu0 %v455
  %v636 = vpop.f32.mrb[0].mxu0
  %v637 = vadd.f32 %v315, %v636
  %v638 = vpop.f32.mrb[0].mxu0
  %639 = vmatprep.mubr.f32.mxu0 0.0
  %640 = vmatmul.mubr.f32.gmra.mrb[0].mxu0 %v458
  %v641 = vpop.f32.mrb[0].mxu0
  %v642 = vadd.f32 %v320, %v641
  %v643 = vpop.f32.mrb[0].mxu0
  %644 = vmatprep.mubr.f32.mxu0 0.0
  %645 = vmatmul.mubr.f32.gmra.mrb[0].mxu0 %v461
  %v646 = vpop.f32.mrb[0].mxu0
  %v647 = vadd.f32 %v325, %v646
  %v648 = vpop.f32.mrb[0].mxu0
  %649 = vmatprep.mubr.f32.mxu0 0.0
  %650 = vmatmul.mubr.f32.gmra.mrb[0].mxu0 %v464
  %v651 = vpop.f32.mrb[0].mxu0
  %v652 = vadd.f32 %v330, %v651
  %v653 = vpop.f32.mrb[0].mxu0
  %654 = vmatprep.mubr.f32.mxu0 0.0
  %655 = vmatmul.mubr.f32.gmra.mrb[0].mxu0 %v467
  %v656 = vpop.f32.mrb[0].mxu0
  %v657 = vadd.f32 %v335, %v656
  %v658 = vpop.f32.mrb[0].mxu0
  %659 = vmatprep.mubr.f32.mxu0 0.0
  %660 = vmatmul.mubr.f32.gmra.mrb[0].mxu0 %v470
  %v661 = vpop.f32.mrb[0].mxu0
  %v662 = vadd.f32 %v340, %v661
  %v663 = vpop.f32.mrb[0].mxu0
  %664 = vmatprep.mubr.f32.mxu0 0.0
  %665 = vmatmul.mubr.f32.gmra.mrb[0].mxu0 %v473
  %v666 = vpop.f32.mrb[0].mxu0
  %v667 = vadd.f32 %v345, %v666
  %v668 = vpop.f32.mrb[0].mxu0
  %669 = vmatprep.mubr.f32.mxu0 0.0
  %670 = vmatmul.mubr.f32.gmra.mrb[0].mxu0 %v476
  %v671 = vpop.f32.mrb[0].mxu0
  %v672 = vadd.f32 %v350, %v671
  %v673 = vpop.f32.mrb[0].mxu0
  %674 = vmatprep.mubr.f32.mxu0 0.0
  %675 = vmatmul.mubr.f32.gmra.mrb[0].mxu0 %v479
  %v676 = vpop.f32.mrb[0].mxu0
  %v677 = vadd.f32 %v355, %v676
  %v678 = vpop.f32.mrb[0].mxu0
  %679 = vmatprep.mubr.f32.mxu0 0.0
  %680 = vmatmul.mubr.f32.gmra.mrb[0].mxu0 %v482
  %v681 = vpop.f32.mrb[0].mxu0
  %v682 = vadd.f32 %v360, %v681
  %v683 = vpop.f32.mrb[0].mxu0
  %684 = vmatprep.mubr.f32.mxu0 0.0
  %685 = vmatmul.mubr.f32.gmra.mrb[0].mxu0 %v485
  %v686 = vpop.f32.mrb[0].mxu0
  %v687 = vadd.f32 %v365, %v686
  %v688 = vpop.f32.mrb[0].mxu0
  %689 = vmatprep.mubr.f32.mxu0 0.0
  %690 = vmatmul.mubr.f32.gmra.mrb[0].mxu0 %v488
  %v691 = vpop.f32.mrb[0].mxu0
  %v692 = vadd.f32 %v370, %v691
  %v693 = vpop.f32.mrb[0].mxu0
  %694 = vmatprep.mubr.f32.mxu0 0.0
  %695 = vmatmul.mubr.f32.gmra.mrb[0].mxu0 %v491
  %v696 = vpop.f32.mrb[0].mxu0
  %v697 = vadd.f32 %v375, %v696
  %v698 = vpop.f32.mrb[0].mxu0
  %699 = vmatprep.mubr.f32.mxu0 0.0
  %700 = vmatmul.mubr.f32.gmra.mrb[0].mxu0 %v494
  %v701 = vpop.f32.mrb[0].mxu0
  %v702 = vadd.f32 %v380, %v701
  %v703 = vpop.f32.mrb[0].mxu0
  %704 = vmatprep.mubr.f32.mxu0 0.0
  %705 = vmatmul.mubr.f32.gmra.mrb[0].mxu0 %v497
  %v706 = vpop.f32.mrb[0].mxu0
  %v707 = vadd.f32 %v385, %v706
  %v708 = vpop.f32.mrb[0].mxu0
  %709 = vmatprep.mubr.f32.mxu0 0.0
  %710 = vmatmul.mubr.f32.gmra.mrb[0].mxu0 %v500
  %v711 = vpop.f32.mrb[0].mxu0
  %v712 = vadd.f32 %v390, %v711
  %v713 = vpop.f32.mrb[0].mxu0
  %714 = vmatprep.mubr.f32.mxu0 0.0
  %715 = vmatmul.mubr.f32.gmra.mrb[0].mxu0 %v503
  %v716 = vpop.f32.mrb[0].mxu0
  %v717 = vadd.f32 %v395, %v716
  %v718 = vpop.f32.mrb[0].mxu0
  %719 = vmatprep.mubr.f32.mxu0 0.0
  %720 = vmatmul.mubr.f32.gmra.mrb[0].mxu0 %v506
  %v721 = vpop.f32.mrb[0].mxu0
  %v722 = vadd.f32 %v400, %v721
  %v723 = vpop.f32.mrb[0].mxu0
  %724 = vmatprep.mubr.f32.mxu0 0.0
  %725 = vmatmul.mubr.f32.gmra.mrb[0].mxu0 %v509
  %v726 = vpop.f32.mrb[0].mxu0
  %v727 = vadd.f32 %v405, %v726
  %v728 = vpop.f32.mrb[0].mxu0
  %729 = vmatprep.mubr.f32.mxu0 0.0
  %730 = vmatmul.mubr.f32.gmra.mrb[0].mxu0 %v512
  %v731 = vpop.f32.mrb[0].mxu0
  %v732 = vadd.f32 %v410, %v731
  %v733 = vpop.f32.mrb[0].mxu0
  %734 = vmatprep.mubr.f32.mxu0 0.0
  %735 = vmatmul.mubr.f32.gmra.mrb[0].mxu0 %v515
  %v736 = vpop.f32.mrb[0].mxu0
  %v737 = vadd.f32 %v415, %v736
  %v738 = vpop.f32.mrb[0].mxu0
  %739 = vmatprep.mubr.f32.mxu0 0.0
  %740 = vmatmul.mubr.f32.gmra.mrb[0].mxu0 %v518
  %v741 = vpop.f32.mrb[0].mxu0
  %v742 = vadd.f32 %v420, %v741
  %v743 = vpop.f32.mrb[0].mxu0
  %744 = vdwg.mxu0
  %v745 = vld [vmem:[%s4] sm:$0x1]
  %v747 = vlaneseq
  %v748 = vshrl.u32 %v747, 7
  %v749 = vsub.s32 0, %v748
  %v750 = vrot.slane %v745, %v749
  %v752 = vadd.f32 %v587, %v750
  %v753 = vadd.f32 %v592, %v750
  %v754 = vadd.f32 %v597, %v750
  %v755 = vadd.f32 %v602, %v750
  %v756 = vadd.f32 %v607, %v750
  %v757 = vadd.f32 %v612, %v750
  %v758 = vadd.f32 %v617, %v750
  %v759 = vadd.f32 %v622, %v750
  %v760 = vadd.f32 %v627, %v750
  %v761 = vadd.f32 %v632, %v750
  %v762 = vadd.f32 %v637, %v750
  %v763 = vadd.f32 %v642, %v750
  %v764 = vadd.f32 %v647, %v750
  %v765 = vadd.f32 %v652, %v750
  %v766 = vadd.f32 %v657, %v750
  %v767 = vadd.f32 %v662, %v750
  %v768 = vadd.f32 %v667, %v750
  %v769 = vadd.f32 %v672, %v750
  %v770 = vadd.f32 %v677, %v750
  %v771 = vadd.f32 %v682, %v750
  %v772 = vadd.f32 %v687, %v750
  %v773 = vadd.f32 %v692, %v750
  %v774 = vadd.f32 %v697, %v750
  %v775 = vadd.f32 %v702, %v750
  %v776 = vadd.f32 %v707, %v750
  %v777 = vadd.f32 %v712, %v750
  %v778 = vadd.f32 %v717, %v750
  %v779 = vadd.f32 %v722, %v750
  %v780 = vadd.f32 %v727, %v750
  %v781 = vadd.f32 %v732, %v750
  %v782 = vadd.f32 %v737, %v750
  %v783 = vadd.f32 %v742, %v750
  %v784 = vmax.f32 %v752, 0.0
  %v785 = vmax.f32 %v753, 0.0
  %v786 = vmax.f32 %v754, 0.0
  %v787 = vmax.f32 %v755, 0.0
  %v788 = vmax.f32 %v756, 0.0
  %v789 = vmax.f32 %v757, 0.0
  %v790 = vmax.f32 %v758, 0.0
  %v791 = vmax.f32 %v759, 0.0
  %v792 = vmax.f32 %v760, 0.0
  %v793 = vmax.f32 %v761, 0.0
  %v794 = vmax.f32 %v762, 0.0
  %v795 = vmax.f32 %v763, 0.0
  %v796 = vmax.f32 %v764, 0.0
  %v797 = vmax.f32 %v765, 0.0
  %v798 = vmax.f32 %v766, 0.0
  %v799 = vmax.f32 %v767, 0.0
  %v800 = vmax.f32 %v768, 0.0
  %v801 = vmax.f32 %v769, 0.0
  %v802 = vmax.f32 %v770, 0.0
  %v803 = vmax.f32 %v771, 0.0
  %v804 = vmax.f32 %v772, 0.0
  %v805 = vmax.f32 %v773, 0.0
  %v806 = vmax.f32 %v774, 0.0
  %v807 = vmax.f32 %v775, 0.0
  %v808 = vmax.f32 %v776, 0.0
  %v809 = vmax.f32 %v777, 0.0
  %v810 = vmax.f32 %v778, 0.0
  %v811 = vmax.f32 %v779, 0.0
  %v812 = vmax.f32 %v780, 0.0
  %v813 = vmax.f32 %v781, 0.0
  %v814 = vmax.f32 %v782, 0.0
  %v815 = vmax.f32 %v783, 0.0
  %v816 = vld [vmem:[%s5] sm:$0xff]
  %v817 = vld [vmem:[%s5 + $0x8] sm:$0xff]
  %v818 = vld [vmem:[%s5 + $0x10] sm:$0xff]
  %v819 = vld [vmem:[%s5 + $0x18] sm:$0xff]
  %v820 = vld [vmem:[%s5 + $0x20] sm:$0xff]
  %v821 = vld [vmem:[%s5 + $0x28] sm:$0xff]
  %v822 = vld [vmem:[%s5 + $0x30] sm:$0xff]
  %v823 = vld [vmem:[%s5 + $0x38] sm:$0xff]
  %v824 = vld [vmem:[%s5 + $0x40] sm:$0xff]
  %v825 = vld [vmem:[%s5 + $0x48] sm:$0xff]
  %v826 = vld [vmem:[%s5 + $0x50] sm:$0xff]
  %v827 = vld [vmem:[%s5 + $0x58] sm:$0xff]
  %v828 = vld [vmem:[%s5 + $0x60] sm:$0xff]
  %v829 = vld [vmem:[%s5 + $0x68] sm:$0xff]
  %v830 = vld [vmem:[%s5 + $0x70] sm:$0xff]
  %v831 = vld [vmem:[%s5 + $0x78] sm:$0xff]
  %v832 = vld [vmem:[%s6] sm:$0x1]
  %v834 = vlaneseq
  %v835 = vshrl.u32 %v834, 7
  %v836 = vsub.s32 0, %v835
  %v837 = vrot.slane %v832, %v836
  %839 = vmatprep.subr.mxu0 0.0
  %840 = vmatpush1.msra.mxu0 %v816
  %841 = vmatprep.subr.mxu0 0.0
  %842 = vmatpush1.msra.mxu0 %v817
  %843 = vmatprep.subr.mxu0 0.0
  %844 = vmatpush1.msra.mxu0 %v818
  %845 = vmatprep.subr.mxu0 0.0
  %846 = vmatpush1.msra.mxu0 %v819
  %847 = vmatprep.subr.mxu0 0.0
  %848 = vmatpush1.msra.mxu0 %v820
  %849 = vmatprep.subr.mxu0 0.0
  %850 = vmatpush1.msra.mxu0 %v821
  %851 = vmatprep.subr.mxu0 0.0
  %852 = vmatpush1.msra.mxu0 %v822
  %853 = vmatprep.subr.mxu0 0.0
  %854 = vmatpush1.msra.mxu0 %v823
  %855 = vmatprep.subr.mxu0 0.0
  %856 = vmatpush1.msra.mxu0 %v824
  %857 = vmatprep.subr.mxu0 0.0
  %858 = vmatpush1.msra.mxu0 %v825
  %859 = vmatprep.subr.mxu0 0.0
  %860 = vmatpush1.msra.mxu0 %v826
  %861 = vmatprep.subr.mxu0 0.0
  %862 = vmatpush1.msra.mxu0 %v827
  %863 = vmatprep.subr.mxu0 0.0
  %864 = vmatpush1.msra.mxu0 %v828
  %865 = vmatprep.subr.mxu0 0.0
  %866 = vmatpush1.msra.mxu0 %v829
  %867 = vmatprep.subr.mxu0 0.0
  %868 = vmatpush1.msra.mxu0 %v830
  %869 = vmatprep.subr.mxu0 0.0
  %870 = vmatpush1.msra.mxu0 %v831
  %871 = vmatprep.subr.mxu0 0.0
  %872 = vmatpush1.msra.mxu0 0.0
  %873 = vmatprep.subr.mxu0 0.0
  %874 = vmatpush1.msra.mxu0 0.0
  %875 = vmatprep.subr.mxu0 0.0
  %876 = vmatpush1.msra.mxu0 0.0
  %877 = vmatprep.subr.mxu0 0.0
  %878 = vmatpush1.msra.mxu0 0.0
  %879 = vmatprep.subr.mxu0 0.0
  %880 = vmatpush1.msra.mxu0 0.0
  %881 = vmatprep.subr.mxu0 0.0
  %882 = vmatpush1.msra.mxu0 0.0
  %883 = vmatprep.subr.mxu0 0.0
  %884 = vmatpush1.msra.mxu0 0.0
  %885 = vmatprep.subr.mxu0 0.0
  %886 = vmatpush1.msra.mxu0 0.0
  %887 = vmatprep.subr.mxu0 0.0
  %888 = vmatpush1.msra.mxu0 0.0
  %889 = vmatprep.subr.mxu0 0.0
  %890 = vmatpush1.msra.mxu0 0.0
  %891 = vmatprep.subr.mxu0 0.0
  %892 = vmatpush1.msra.mxu0 0.0
  %893 = vmatprep.subr.mxu0 0.0
  %894 = vmatpush1.msra.mxu0 0.0
  %895 = vmatprep.subr.mxu0 0.0
  %896 = vmatpush1.msra.mxu0 0.0
  %897 = vmatprep.subr.mxu0 0.0
  %898 = vmatpush1.msra.mxu0 0.0
  %899 = vmatprep.subr.mxu0 0.0
  %900 = vmatpush1.msra.mxu0 0.0
  %901 = vmatprep.subr.mxu0 0.0
  %902 = vmatpush1.msra.mxu0 0.0
  %903 = vmatprep.mubr.f32.mxu0 0.0
  %904 = vmatmul.mubr.f32.gmra.mrb[0].mxu0 %v784
  %v905 = vpop.f32.mrb[0].mxu0
  %v906 = vadd.f32 %v837, %v905
  %v907 = vpop.f32.mrb[0].mxu0
  %908 = vmatprep.mubr.f32.mxu0 0.0
  %909 = vmatmul.mubr.f32.gmra.mrb[0].mxu0 %v785
  %v910 = vpop.f32.mrb[0].mxu0
  %v911 = vadd.f32 %v837, %v910
  %v912 = vpop.f32.mrb[0].mxu0
  %913 = vmatprep.mubr.f32.mxu0 0.0
  %914 = vmatmul.mubr.f32.gmra.mrb[0].mxu0 %v786
  %v915 = vpop.f32.mrb[0].mxu0
  %v916 = vadd.f32 %v837, %v915
  %v917 = vpop.f32.mrb[0].mxu0
  %918 = vmatprep.mubr.f32.mxu0 0.0
  %919 = vmatmul.mubr.f32.gmra.mrb[0].mxu0 %v787
  %v920 = vpop.f32.mrb[0].mxu0
  %v921 = vadd.f32 %v837, %v920
  %v922 = vpop.f32.mrb[0].mxu0
  %923 = vmatprep.mubr.f32.mxu0 0.0
  %924 = vmatmul.mubr.f32.gmra.mrb[0].mxu0 %v788
  %v925 = vpop.f32.mrb[0].mxu0
  %v926 = vadd.f32 %v837, %v925
  %v927 = vpop.f32.mrb[0].mxu0
  %928 = vmatprep.mubr.f32.mxu0 0.0
  %929 = vmatmul.mubr.f32.gmra.mrb[0].mxu0 %v789
  %v930 = vpop.f32.mrb[0].mxu0
  %v931 = vadd.f32 %v837, %v930
  %v932 = vpop.f32.mrb[0].mxu0
  %933 = vmatprep.mubr.f32.mxu0 0.0
  %934 = vmatmul.mubr.f32.gmra.mrb[0].mxu0 %v790
  %v935 = vpop.f32.mrb[0].mxu0
  %v936 = vadd.f32 %v837, %v935
  %v937 = vpop.f32.mrb[0].mxu0
  %938 = vmatprep.mubr.f32.mxu0 0.0
  %939 = vmatmul.mubr.f32.gmra.mrb[0].mxu0 %v791
  %v940 = vpop.f32.mrb[0].mxu0
  %v941 = vadd.f32 %v837, %v940
  %v942 = vpop.f32.mrb[0].mxu0
  %943 = vmatprep.mubr.f32.mxu0 0.0
  %944 = vmatmul.mubr.f32.gmra.mrb[0].mxu0 %v792
  %v945 = vpop.f32.mrb[0].mxu0
  %v946 = vadd.f32 %v837, %v945
  %v947 = vpop.f32.mrb[0].mxu0
  %948 = vmatprep.mubr.f32.mxu0 0.0
  %949 = vmatmul.mubr.f32.gmra.mrb[0].mxu0 %v793
  %v950 = vpop.f32.mrb[0].mxu0
  %v951 = vadd.f32 %v837, %v950
  %v952 = vpop.f32.mrb[0].mxu0
  %953 = vmatprep.mubr.f32.mxu0 0.0
  %954 = vmatmul.mubr.f32.gmra.mrb[0].mxu0 %v794
  %v955 = vpop.f32.mrb[0].mxu0
  %v956 = vadd.f32 %v837, %v955
  %v957 = vpop.f32.mrb[0].mxu0
  %958 = vmatprep.mubr.f32.mxu0 0.0
  %959 = vmatmul.mubr.f32.gmra.mrb[0].mxu0 %v795
  %v960 = vpop.f32.mrb[0].mxu0
  %v961 = vadd.f32 %v837, %v960
  %v962 = vpop.f32.mrb[0].mxu0
  %963 = vmatprep.mubr.f32.mxu0 0.0
  %964 = vmatmul.mubr.f32.gmra.mrb[0].mxu0 %v796
  %v965 = vpop.f32.mrb[0].mxu0
  %v966 = vadd.f32 %v837, %v965
  %v967 = vpop.f32.mrb[0].mxu0
  %968 = vmatprep.mubr.f32.mxu0 0.0
  %969 = vmatmul.mubr.f32.gmra.mrb[0].mxu0 %v797
  %v970 = vpop.f32.mrb[0].mxu0
  %v971 = vadd.f32 %v837, %v970
  %v972 = vpop.f32.mrb[0].mxu0
  %973 = vmatprep.mubr.f32.mxu0 0.0
  %974 = vmatmul.mubr.f32.gmra.mrb[0].mxu0 %v798
  %v975 = vpop.f32.mrb[0].mxu0
  %v976 = vadd.f32 %v837, %v975
  %v977 = vpop.f32.mrb[0].mxu0
  %978 = vmatprep.mubr.f32.mxu0 0.0
  %979 = vmatmul.mubr.f32.gmra.mrb[0].mxu0 %v799
  %v980 = vpop.f32.mrb[0].mxu0
  %v981 = vadd.f32 %v837, %v980
  %v982 = vpop.f32.mrb[0].mxu0
  %983 = vmatprep.mubr.f32.mxu0 0.0
  %984 = vmatmul.mubr.f32.gmra.mrb[0].mxu0 %v800
  %v985 = vpop.f32.mrb[0].mxu0
  %v986 = vadd.f32 %v837, %v985
  %v987 = vpop.f32.mrb[0].mxu0
  %988 = vmatprep.mubr.f32.mxu0 0.0
  %989 = vmatmul.mubr.f32.gmra.mrb[0].mxu0 %v801
  %v990 = vpop.f32.mrb[0].mxu0
  %v991 = vadd.f32 %v837, %v990
  %v992 = vpop.f32.mrb[0].mxu0
  %993 = vmatprep.mubr.f32.mxu0 0.0
  %994 = vmatmul.mubr.f32.gmra.mrb[0].mxu0 %v802
  %v995 = vpop.f32.mrb[0].mxu0
  %v996 = vadd.f32 %v837, %v995
  %v997 = vpop.f32.mrb[0].mxu0
  %998 = vmatprep.mubr.f32.mxu0 0.0
  %999 = vmatmul.mubr.f32.gmra.mrb[0].mxu0 %v803
  %v1000 = vpop.f32.mrb[0].mxu0
  %v1001 = vadd.f32 %v837, %v1000
  %v1002 = vpop.f32.mrb[0].mxu0
  %1003 = vmatprep.mubr.f32.mxu0 0.0
  %1004 = vmatmul.mubr.f32.gmra.mrb[0].mxu0 %v804
  %v1005 = vpop.f32.mrb[0].mxu0
  %v1006 = vadd.f32 %v837, %v1005
  %v1007 = vpop.f32.mrb[0].mxu0
  %1008 = vmatprep.mubr.f32.mxu0 0.0
  %1009 = vmatmul.mubr.f32.gmra.mrb[0].mxu0 %v805
  %v1010 = vpop.f32.mrb[0].mxu0
  %v1011 = vadd.f32 %v837, %v1010
  %v1012 = vpop.f32.mrb[0].mxu0
  %1013 = vmatprep.mubr.f32.mxu0 0.0
  %1014 = vmatmul.mubr.f32.gmra.mrb[0].mxu0 %v806
  %v1015 = vpop.f32.mrb[0].mxu0
  %v1016 = vadd.f32 %v837, %v1015
  %v1017 = vpop.f32.mrb[0].mxu0
  %1018 = vmatprep.mubr.f32.mxu0 0.0
  %1019 = vmatmul.mubr.f32.gmra.mrb[0].mxu0 %v807
  %v1020 = vpop.f32.mrb[0].mxu0
  %v1021 = vadd.f32 %v837, %v1020
  %v1022 = vpop.f32.mrb[0].mxu0
  %1023 = vmatprep.mubr.f32.mxu0 0.0
  %1024 = vmatmul.mubr.f32.gmra.mrb[0].mxu0 %v808
  %v1025 = vpop.f32.mrb[0].mxu0
  %v1026 = vadd.f32 %v837, %v1025
  %v1027 = vpop.f32.mrb[0].mxu0
  %1028 = vmatprep.mubr.f32.mxu0 0.0
  %1029 = vmatmul.mubr.f32.gmra.mrb[0].mxu0 %v809
  %v1030 = vpop.f32.mrb[0].mxu0
  %v1031 = vadd.f32 %v837, %v1030
  %v1032 = vpop.f32.mrb[0].mxu0
  %1033 = vmatprep.mubr.f32.mxu0 0.0
  %1034 = vmatmul.mubr.f32.gmra.mrb[0].mxu0 %v810
  %v1035 = vpop.f32.mrb[0].mxu0
  %v1036 = vadd.f32 %v837, %v1035
  %v1037 = vpop.f32.mrb[0].mxu0
  %1038 = vmatprep.mubr.f32.mxu0 0.0
  %1039 = vmatmul.mubr.f32.gmra.mrb[0].mxu0 %v811
  %v1040 = vpop.f32.mrb[0].mxu0
  %v1041 = vadd.f32 %v837, %v1040
  %v1042 = vpop.f32.mrb[0].mxu0
  %1043 = vmatprep.mubr.f32.mxu0 0.0
  %1044 = vmatmul.mubr.f32.gmra.mrb[0].mxu0 %v812
  %v1045 = vpop.f32.mrb[0].mxu0
  %v1046 = vadd.f32 %v837, %v1045
  %v1047 = vpop.f32.mrb[0].mxu0
  %1048 = vmatprep.mubr.f32.mxu0 0.0
  %1049 = vmatmul.mubr.f32.gmra.mrb[0].mxu0 %v813
  %v1050 = vpop.f32.mrb[0].mxu0
  %v1051 = vadd.f32 %v837, %v1050
  %v1052 = vpop.f32.mrb[0].mxu0
  %1053 = vmatprep.mubr.f32.mxu0 0.0
  %1054 = vmatmul.mubr.f32.gmra.mrb[0].mxu0 %v814
  %v1055 = vpop.f32.mrb[0].mxu0
  %v1056 = vadd.f32 %v837, %v1055
  %v1057 = vpop.f32.mrb[0].mxu0
  %1058 = vmatprep.mubr.f32.mxu0 0.0
  %1059 = vmatmul.mubr.f32.gmra.mrb[0].mxu0 %v815
  %v1060 = vpop.f32.mrb[0].mxu0
  %v1061 = vadd.f32 %v837, %v1060
  %v1062 = vpop.f32.mrb[0].mxu0
  %1063 = vdwg.mxu0
  %v1064 = vmax.f32 %v906, 0.0
  %v1065 = vmax.f32 %v911, 0.0
  %v1066 = vmax.f32 %v916, 0.0
  %v1067 = vmax.f32 %v921, 0.0
  %v1068 = vmax.f32 %v926, 0.0
  %v1069 = vmax.f32 %v931, 0.0
  %v1070 = vmax.f32 %v936, 0.0
  %v1071 = vmax.f32 %v941, 0.0
  %v1072 = vmax.f32 %v946, 0.0
  %v1073 = vmax.f32 %v951, 0.0
  %v1074 = vmax.f32 %v956, 0.0
  %v1075 = vmax.f32 %v961, 0.0
  %v1076 = vmax.f32 %v966, 0.0
  %v1077 = vmax.f32 %v971, 0.0
  %v1078 = vmax.f32 %v976, 0.0
  %v1079 = vmax.f32 %v981, 0.0
  %v1080 = vmax.f32 %v986, 0.0
  %v1081 = vmax.f32 %v991, 0.0
  %v1082 = vmax.f32 %v996, 0.0
  %v1083 = vmax.f32 %v1001, 0.0
  %v1084 = vmax.f32 %v1006, 0.0
  %v1085 = vmax.f32 %v1011, 0.0
  %v1086 = vmax.f32 %v1016, 0.0
  %v1087 = vmax.f32 %v1021, 0.0
  %v1088 = vmax.f32 %v1026, 0.0
  %v1089 = vmax.f32 %v1031, 0.0
  %v1090 = vmax.f32 %v1036, 0.0
  %v1091 = vmax.f32 %v1041, 0.0
  %v1092 = vmax.f32 %v1046, 0.0
  %v1093 = vmax.f32 %v1051, 0.0
  %v1094 = vmax.f32 %v1056, 0.0
  %v1095 = vmax.f32 %v1061, 0.0
  %v1096 = vld [vmem:[%s7] sm:$0x1]
  %v1098 = vlaneseq
  %v1099 = vshrl.u32 %v1098, 7
  %v1100 = vsub.s32 0, %v1099
  %v1101 = vrot.slane %v1096, %v1100
  %v1103 = vmul.f32 %v1064, %v1101
  %v1104 = vmul.f32 %v1065, %v1101
  %v1105 = vmul.f32 %v1066, %v1101
  %v1106 = vmul.f32 %v1067, %v1101
  %v1107 = vmul.f32 %v1068, %v1101
  %v1108 = vmul.f32 %v1069, %v1101
  %v1109 = vmul.f32 %v1070, %v1101
  %v1110 = vmul.f32 %v1071, %v1101
  %v1111 = vmul.f32 %v1072, %v1101
  %v1112 = vmul.f32 %v1073, %v1101
  %v1113 = vmul.f32 %v1074, %v1101
  %v1114 = vmul.f32 %v1075, %v1101
  %v1115 = vmul.f32 %v1076, %v1101
  %v1116 = vmul.f32 %v1077, %v1101
  %v1117 = vmul.f32 %v1078, %v1101
  %v1118 = vmul.f32 %v1079, %v1101
  %v1119 = vmul.f32 %v1080, %v1101
  %v1120 = vmul.f32 %v1081, %v1101
  %v1121 = vmul.f32 %v1082, %v1101
  %v1122 = vmul.f32 %v1083, %v1101
  %v1123 = vmul.f32 %v1084, %v1101
  %v1124 = vmul.f32 %v1085, %v1101
  %v1125 = vmul.f32 %v1086, %v1101
  %v1126 = vmul.f32 %v1087, %v1101
  %v1127 = vmul.f32 %v1088, %v1101
  %v1128 = vmul.f32 %v1089, %v1101
  %v1129 = vmul.f32 %v1090, %v1101
  %v1130 = vmul.f32 %v1091, %v1101
  %v1131 = vmul.f32 %v1092, %v1101
  %v1132 = vmul.f32 %v1093, %v1101
  %v1133 = vmul.f32 %v1094, %v1101
  %v1134 = vmul.f32 %v1095, %v1101
  %1135 = vadd.xlane.f32.xlu0 %v1103
  %v1136 = vpop.xlane.xlu0 %1135
  %1137 = vadd.xlane.f32.xlu0 %v1104
  %v1138 = vpop.xlane.xlu0 %1137
  %1139 = vadd.xlane.f32.xlu0 %v1105
  %v1140 = vpop.xlane.xlu0 %1139
  %1141 = vadd.xlane.f32.xlu0 %v1106
  %v1142 = vpop.xlane.xlu0 %1141
  %1143 = vadd.xlane.f32.xlu0 %v1107
  %v1144 = vpop.xlane.xlu0 %1143
  %1145 = vadd.xlane.f32.xlu0 %v1108
  %v1146 = vpop.xlane.xlu0 %1145
  %1147 = vadd.xlane.f32.xlu0 %v1109
  %v1148 = vpop.xlane.xlu0 %1147
  %1149 = vadd.xlane.f32.xlu0 %v1110
  %v1150 = vpop.xlane.xlu0 %1149
  %1151 = vadd.xlane.f32.xlu0 %v1111
  %v1152 = vpop.xlane.xlu0 %1151
  %1153 = vadd.xlane.f32.xlu0 %v1112
  %v1154 = vpop.xlane.xlu0 %1153
  %1155 = vadd.xlane.f32.xlu0 %v1113
  %v1156 = vpop.xlane.xlu0 %1155
  %1157 = vadd.xlane.f32.xlu0 %v1114
  %v1158 = vpop.xlane.xlu0 %1157
  %1159 = vadd.xlane.f32.xlu0 %v1115
  %v1160 = vpop.xlane.xlu0 %1159
  %1161 = vadd.xlane.f32.xlu0 %v1116
  %v1162 = vpop.xlane.xlu0 %1161
  %1163 = vadd.xlane.f32.xlu0 %v1117
  %v1164 = vpop.xlane.xlu0 %1163
  %1165 = vadd.xlane.f32.xlu0 %v1118
  %v1166 = vpop.xlane.xlu0 %1165
  %1167 = vadd.xlane.f32.xlu0 %v1119
  %v1168 = vpop.xlane.xlu0 %1167
  %1169 = vadd.xlane.f32.xlu0 %v1120
  %v1170 = vpop.xlane.xlu0 %1169
  %1171 = vadd.xlane.f32.xlu0 %v1121
  %v1172 = vpop.xlane.xlu0 %1171
  %1173 = vadd.xlane.f32.xlu0 %v1122
  %v1174 = vpop.xlane.xlu0 %1173
  %1175 = vadd.xlane.f32.xlu0 %v1123
  %v1176 = vpop.xlane.xlu0 %1175
  %1177 = vadd.xlane.f32.xlu0 %v1124
  %v1178 = vpop.xlane.xlu0 %1177
  %1179 = vadd.xlane.f32.xlu0 %v1125
  %v1180 = vpop.xlane.xlu0 %1179
  %1181 = vadd.xlane.f32.xlu0 %v1126
  %v1182 = vpop.xlane.xlu0 %1181
  %1183 = vadd.xlane.f32.xlu0 %v1127
  %v1184 = vpop.xlane.xlu0 %1183
  %1185 = vadd.xlane.f32.xlu0 %v1128
  %v1186 = vpop.xlane.xlu0 %1185
  %1187 = vadd.xlane.f32.xlu0 %v1129
  %v1188 = vpop.xlane.xlu0 %1187
  %1189 = vadd.xlane.f32.xlu0 %v1130
  %v1190 = vpop.xlane.xlu0 %1189
  %1191 = vadd.xlane.f32.xlu0 %v1131
  %v1192 = vpop.xlane.xlu0 %1191
  %1193 = vadd.xlane.f32.xlu0 %v1132
  %v1194 = vpop.xlane.xlu0 %1193
  %1195 = vadd.xlane.f32.xlu0 %v1133
  %v1196 = vpop.xlane.xlu0 %1195
  %1197 = vadd.xlane.f32.xlu0 %v1134
  %v1198 = vpop.xlane.xlu0 %1197
  %v1199 = vld [vmem:[#allocation2] sm:$0x1]
  %v1201 = vlaneseq
  %v1202 = vshrl.u32 %v1201, 7
  %v1203 = vsub.s32 0, %v1202
  %v1204 = vrot.slane %v1199, %v1203
  %v1206 = vadd.f32 %v1136, %v1204
  %v1207 = vadd.f32 %v1138, %v1204
  %v1208 = vadd.f32 %v1140, %v1204
  %v1209 = vadd.f32 %v1142, %v1204
  %v1210 = vadd.f32 %v1144, %v1204
  %v1211 = vadd.f32 %v1146, %v1204
  %v1212 = vadd.f32 %v1148, %v1204
  %v1213 = vadd.f32 %v1150, %v1204
  %v1214 = vadd.f32 %v1152, %v1204
  %v1215 = vadd.f32 %v1154, %v1204
  %v1216 = vadd.f32 %v1156, %v1204
  %v1217 = vadd.f32 %v1158, %v1204
  %v1218 = vadd.f32 %v1160, %v1204
  %v1219 = vadd.f32 %v1162, %v1204
  %v1220 = vadd.f32 %v1164, %v1204
  %v1221 = vadd.f32 %v1166, %v1204
  %v1222 = vadd.f32 %v1168, %v1204
  %v1223 = vadd.f32 %v1170, %v1204
  %v1224 = vadd.f32 %v1172, %v1204
  %v1225 = vadd.f32 %v1174, %v1204
  %v1226 = vadd.f32 %v1176, %v1204
  %v1227 = vadd.f32 %v1178, %v1204
  %v1228 = vadd.f32 %v1180, %v1204
  %v1229 = vadd.f32 %v1182, %v1204
  %v1230 = vadd.f32 %v1184, %v1204
  %v1231 = vadd.f32 %v1186, %v1204
  %v1232 = vadd.f32 %v1188, %v1204
  %v1233 = vadd.f32 %v1190, %v1204
  %v1234 = vadd.f32 %v1192, %v1204
  %v1235 = vadd.f32 %v1194, %v1204
  %v1236 = vadd.f32 %v1196, %v1204
  %v1237 = vadd.f32 %v1198, %v1204
  %vm1238 = vcmask 7168
  %1239 = vst.msk [vmem:[%s9] sm:$0xff] %vm1238, %v1206
  %1240 = vst.msk [vmem:[%s9 + $0x8] sm:$0xff] %vm1238, %v1207
  %1241 = vst.msk [vmem:[%s9 + $0x10] sm:$0xff] %vm1238, %v1208
  %1242 = vst.msk [vmem:[%s9 + $0x18] sm:$0xff] %vm1238, %v1209
  %1243 = vst.msk [vmem:[%s9 + $0x20] sm:$0xff] %vm1238, %v1210
  %1244 = vst.msk [vmem:[%s9 + $0x28] sm:$0xff] %vm1238, %v1211
  %1245 = vst.msk [vmem:[%s9 + $0x30] sm:$0xff] %vm1238, %v1212
  %1246 = vst.msk [vmem:[%s9 + $0x38] sm:$0xff] %vm1238, %v1213
  %1247 = vst.msk [vmem:[%s9 + $0x40] sm:$0xff] %vm1238, %v1214
  %1248 = vst.msk [vmem:[%s9 + $0x48] sm:$0xff] %vm1238, %v1215
  %1249 = vst.msk [vmem:[%s9 + $0x50] sm:$0xff] %vm1238, %v1216
  %1250 = vst.msk [vmem:[%s9 + $0x58] sm:$0xff] %vm1238, %v1217
  %1251 = vst.msk [vmem:[%s9 + $0x60] sm:$0xff] %vm1238, %v1218
  %1252 = vst.msk [vmem:[%s9 + $0x68] sm:$0xff] %vm1238, %v1219
  %1253 = vst.msk [vmem:[%s9 + $0x70] sm:$0xff] %vm1238, %v1220
  %1254 = vst.msk [vmem:[%s9 + $0x78] sm:$0xff] %vm1238, %v1221
  %1255 = vst.msk [vmem:[%s9 + $0x80] sm:$0xff] %vm1238, %v1222
  %1256 = vst.msk [vmem:[%s9 + $0x88] sm:$0xff] %vm1238, %v1223
  %1257 = vst.msk [vmem:[%s9 + $0x90] sm:$0xff] %vm1238, %v1224
  %1258 = vst.msk [vmem:[%s9 + $0x98] sm:$0xff] %vm1238, %v1225
  %1259 = vst.msk [vmem:[%s9 + $0xa0] sm:$0xff] %vm1238, %v1226
  %1260 = vst.msk [vmem:[%s9 + $0xa8] sm:$0xff] %vm1238, %v1227
  %1261 = vst.msk [vmem:[%s9 + $0xb0] sm:$0xff] %vm1238, %v1228
  %1262 = vst.msk [vmem:[%s9 + $0xb8] sm:$0xff] %vm1238, %v1229
  %1263 = vst.msk [vmem:[%s9 + $0xc0] sm:$0xff] %vm1238, %v1230
  %1264 = vst.msk [vmem:[%s9 + $0xc8] sm:$0xff] %vm1238, %v1231
  %1265 = vst.msk [vmem:[%s9 + $0xd0] sm:$0xff] %vm1238, %v1232
  %1266 = vst.msk [vmem:[%s9 + $0xd8] sm:$0xff] %vm1238, %v1233
  %1267 = vst.msk [vmem:[%s9 + $0xe0] sm:$0xff] %vm1238, %v1234
  %1268 = vst.msk [vmem:[%s9 + $0xe8] sm:$0xff] %vm1238, %v1235
  %1269 = vst.msk [vmem:[%s9 + $0xf0] sm:$0xff] %vm1238, %v1236
  %1270 = vst.msk [vmem:[%s9 + $0xf8] sm:$0xff] %vm1238, %v1237
  // Predicated region
  $region38: #{tpu_custom_call.1} parent=0 // pred_check
    _
  $region39: #{tpu_custom_call.1} parent=0 // pred_check_branch
    %1272 = sbr.rel (0) target = $region41
  $region40: #{tpu_custom_call.1} parent=0 // pred_region
    _
  $region41: #{tpu_custom_call.1} parent=0 // pred_fallthru
    _
  // Predicated region
  $region42: #{tpu_custom_call.1} parent=0 // pred_check
    _
  $region43: #{tpu_custom_call.1} parent=0 // pred_check_branch
    %1274 = sbr.rel (0) target = $region45
  $region44: #{tpu_custom_call.1} parent=0 // pred_region
    _
  $region45: #{tpu_custom_call.1} parent=0 // pred_fallthru
    _

</llo_original>
